<compile_context>
chip_gen: v7x
topology: tpu7x:2x2x1
jax: 0.10.0
libtpu: 0.0.40
codegen_flags: <defaults>
</compile_context>

<pallas_src>
import functools

import jax
import jax.numpy as jnp
from jax.experimental import pallas as pl
from jax.experimental.pallas import tpu as pltpu

EPS = 1e-12


def _round_up(x, m):
    return ((x + m - 1) // m) * m


def _output_kernel(h_ref, res_ref, w_ref, params_ref, o_ref, *, hidden_size):
    # h_ref:      [tm, I]
    # res_ref:    [tm, Hp]
    # w_ref:      [I, Hp]   (resident, single-buffered)
    # params_ref: [3, Hp]   (resident; rows = bias, gamma, beta; f32)
    # o_ref:      [tm, Hp]
    params = params_ref[...]
    b = params[0:1, :]
    gamma = params[1:2, :]
    beta = params[2:3, :]

    # Dense: native-dtype operands on the MXU, f32 accumulation.
    y = jnp.dot(h_ref[...], w_ref[...], preferred_element_type=jnp.float32)
    y = y + b + res_ref[...].astype(jnp.float32)

    # TODO(synk): training-mode dropout (PRNG mask + inverted scaling) not
    # implemented; eval-mode dropout is identity, matching inference.

    inv_h = jnp.float32(1.0 / hidden_size)
    hp = o_ref.shape[-1]
    # Padded lanes of y are exactly 0 (zero-padded weight cols, bias, residual),
    # so the mean needs no mask.
    u = jnp.sum(y, axis=-1, keepdims=True) * inv_h
    d = y - u
    if hp != hidden_size:
        # Single select: zero padded lanes of the deviation so they drop out of
        # the variance; padded output lanes are then exactly 0 (gamma=beta=0).
        lane = jax.lax.broadcasted_iota(jnp.int32, d.shape, 1)
        d = jnp.where(lane < hidden_size, d, 0.0)
    s = jnp.sum(d * d, axis=-1, keepdims=True) * inv_h
    x = d * jax.lax.rsqrt(s + EPS)
    o_ref[...] = (gamma * x + beta).astype(o_ref.dtype)


def prepare_output_params(weight_t, bias, gamma, beta):
    """Pad / pack the static parameters once (hoisted out of the forward path).

    Returns (w_padded [I, Hp], params [3, Hp] f32, hidden_size).
    """
    I, H = weight_t.shape
    Hp = _round_up(H, 128)
    pad_h = Hp - H
    w = jnp.pad(weight_t, ((0, 0), (0, pad_h))) if pad_h else weight_t
    params = jnp.stack(
        [
            jnp.pad(bias.reshape(-1).astype(jnp.float32), (0, pad_h)),
            jnp.pad(gamma.reshape(-1).astype(jnp.float32), (0, pad_h)),
            jnp.pad(beta.reshape(-1).astype(jnp.float32), (0, pad_h)),
        ],
        axis=0,
    )
    return w, params, H


def output_forward(hidden_states, input_tensor, w_padded, params, hidden_size,
                   *, tm=None, vmem_limit_bytes=None):
    """hidden_states: [N, I], input_tensor: [N, H]; w_padded/params from
    prepare_output_params()."""
    N, I = hidden_states.shape
    Hp = w_padded.shape[1]
    H = hidden_size
    pad_h = Hp - H

    if vmem_limit_bytes is None:
        # Above v5e's 16 MiB scoped default, below v7x's 64 MiB physical VMEM.
        vmem_limit_bytes = 48 * 1024 * 1024

    # Row tile: respect (8,128) f32 / (16,128) bf16 tiling; derive from a VMEM
    # budget so the 2-deep activation pipeline + resident weight fit.
    row_align = 16 if hidden_states.dtype == jnp.bfloat16 else 8
    if tm is None:
        isz = jnp.dtype(hidden_states.dtype).itemsize
        resident = I * Hp * jnp.dtype(w_padded.dtype).itemsize + 3 * Hp * 4
        # double-buffered activation/residual/output tiles + f32 LN temps
        per_row = 2 * I * isz + 4 * Hp * isz + 6 * Hp * 4
        avail = max(vmem_limit_bytes - 8 * 1024 * 1024 - resident, 0)
        tm = max(row_align, (avail // per_row) // row_align * row_align)
        tm = min(tm, 512)
        # Keep >= 2 grid steps when N allows (v7x megacore + DMA/compute overlap).
        if N > row_align:
            tm = min(tm, _round_up(-(-N // 2), row_align))
        tm = min(tm, _round_up(N, row_align))
    tm = max(row_align, _round_up(tm, row_align))
    # TODO(synk): for very large I (>= ~8192) add a K ('arbitrary') grid axis
    # with a f32 VMEM accumulator instead of a fully-resident [I, Hp] weight.

    # Lane-dense feature dim for residual/output (no masked vst).
    res = jnp.pad(input_tensor, ((0, 0), (0, pad_h))) if pad_h else input_tensor

    kernel = functools.partial(_output_kernel, hidden_size=H)
    grid = (pl.cdiv(N, tm),)

    def call(single_buffer_resident):
        resident_kw = (
            dict(pipeline_mode=pl.Buffered(1)) if single_buffer_resident else {}
        )
        return pl.pallas_call(
            kernel,
            out_shape=jax.ShapeDtypeStruct((N, Hp), hidden_states.dtype),
            grid_spec=pltpu.PrefetchScalarGridSpec(
                num_scalar_prefetch=0,
                grid=grid,
                in_specs=[
                    pl.BlockSpec((tm, I), lambda i: (i, 0)),    # activations tile
                    pl.BlockSpec((tm, Hp), lambda i: (i, 0)),   # residual tile
                    pl.BlockSpec((I, Hp), lambda i: (0, 0), **resident_kw),
                    pl.BlockSpec((3, Hp), lambda i: (0, 0), **resident_kw),
                ],
                out_specs=pl.BlockSpec((tm, Hp), lambda i: (i, 0)),
            ),
            compiler_params=pltpu.CompilerParams(
                dimension_semantics=("parallel",),
                vmem_limit_bytes=vmem_limit_bytes,
            ),
        )(hidden_states, res, w_padded, params)

    try:
        out = call(True)   # single-buffer the resident weight/params
    except Exception:
        out = call(False)  # fallback if this build rejects Buffered(1)

    return out[:, :H] if pad_h else out


def reference(hidden_states, input_tensor, weight_t, bias, gamma, beta):
    y = hidden_states.astype(jnp.float32) @ weight_t.astype(jnp.float32) + bias
    y = y + input_tensor.astype(jnp.float32)
    u = jnp.mean(y, axis=-1, keepdims=True)
    s = jnp.mean((y - u) ** 2, axis=-1, keepdims=True)
    x = (y - u) / jnp.sqrt(s + EPS)
    return gamma * x + beta


if __name__ == "__main__":
    # Small shapes consistent with the module's forward:
    #   batch=2, seq=8 -> N=16 tokens, intermediate=64, hidden=32
    batch, seq, intermediate_size, hidden_size = 2, 8, 64, 32
    N = batch * seq

    key = jax.random.PRNGKey(0)
    k1, k2, k3, k4 = jax.random.split(key, 4)

    hidden_states = jax.random.normal(k1, (N, intermediate_size), jnp.float32)
    input_tensor = jax.random.normal(k2, (N, hidden_size), jnp.float32)

    # Deterministic parameter init (nn.Linear-like scale), stored transposed.
    bound = 1.0 / (intermediate_size ** 0.5)
    weight_t = jax.random.uniform(
        k3, (intermediate_size, hidden_size), jnp.float32, -bound, bound)
    bias = jax.random.uniform(k4, (hidden_size,), jnp.float32, -bound, bound)
    gamma = jnp.ones((hidden_size,), jnp.float32)
    beta = jnp.zeros((hidden_size,), jnp.float32)

    # Static-parameter padding/packing hoisted out of the per-forward path.
    w_padded, params, H = prepare_output_params(weight_t, bias, gamma, beta)

    out = output_forward(hidden_states, input_tensor, w_padded, params, H)
    out = jax.block_until_ready(out)

    ref = reference(hidden_states, input_tensor, weight_t, bias, gamma, beta)
    assert out.shape == (N, hidden_size)
    assert jnp.allclose(out, ref, atol=1e-5, rtol=1e-5), "mismatch vs reference"

    print("KERNEL_OK")
</pallas_src>

<mosaic_0001>
module attributes {stable_mosaic.version = 11 : i64} {
  func.func @_output_kernel(%arg0: i32, %arg1: memref<8x64xf32, #tpu.memory_space<vmem>>, %arg2: memref<8x128xf32, #tpu.memory_space<vmem>>, %arg3: memref<64x128xf32, #tpu.memory_space<vmem>>, %arg4: memref<3x128xf32, #tpu.memory_space<vmem>>, %arg5: memref<8x128xf32, #tpu.memory_space<vmem>>) attributes {dimension_semantics = [#tpu.dimension_semantics<parallel>], iteration_bounds = array<i64: 2>, scalar_prefetch = 0 : i64, scratch_operands = 0 : i64, tpu.core_type = #tpu.core_type<tc>, window_params = [{transform_indices = @transform_0, window_bounds = array<i64: 8, 64>}, {transform_indices = @transform_1, window_bounds = array<i64: 8, 128>}, {pipeline_mode = #tpu.pipeline_mode<synchronous>, transform_indices = @transform_2, window_bounds = array<i64: 64, 128>}, {pipeline_mode = #tpu.pipeline_mode<synchronous>, transform_indices = @transform_3, window_bounds = array<i64: 3, 128>}, {transform_indices = @transform_4, window_bounds = array<i64: 8, 128>}]} {
    %c0 = arith.constant 0 : index
    %c0_0 = arith.constant 0 : index
    %0 = vector.load %arg4[%c0, %c0_0] : memref<3x128xf32, #tpu.memory_space<vmem>>, vector<3x128xf32>
    %1 = vector.extract_strided_slice %0 {offsets = [0, 0], sizes = [1, 128], strides = [1, 1]} : vector<3x128xf32> to vector<1x128xf32>
    %2 = vector.extract_strided_slice %0 {offsets = [1, 0], sizes = [1, 128], strides = [1, 1]} : vector<3x128xf32> to vector<1x128xf32>
    %3 = vector.extract_strided_slice %0 {offsets = [2, 0], sizes = [1, 128], strides = [1, 1]} : vector<3x128xf32> to vector<1x128xf32>
    %c0_1 = arith.constant 0 : index
    %c0_2 = arith.constant 0 : index
    %4 = vector.load %arg1[%c0_1, %c0_2] : memref<8x64xf32, #tpu.memory_space<vmem>>, vector<8x64xf32>
    %c0_3 = arith.constant 0 : index
    %c0_4 = arith.constant 0 : index
    %5 = vector.load %arg3[%c0_3, %c0_4] : memref<64x128xf32, #tpu.memory_space<vmem>>, vector<64x128xf32>
    %cst = arith.constant dense<0.000000e+00> : vector<8x128xf32>
    %6 = tpu.matmul %4, %5, %cst {dimension_numbers = #tpu.dot_dimension_numbers<[1], [0], [0], [1], [0, 0, 1, 1], [], []>} : vector<8x64xf32>, vector<64x128xf32>, vector<8x128xf32> -> vector<8x128xf32>
    %7 = vector.broadcast %1 : vector<1x128xf32> to vector<8x128xf32>
    %8 = arith.addf %6, %7 : vector<8x128xf32>
    %c0_5 = arith.constant 0 : index
    %c0_6 = arith.constant 0 : index
    %9 = vector.load %arg2[%c0_5, %c0_6] : memref<8x128xf32, #tpu.memory_space<vmem>>, vector<8x128xf32>
    %10 = arith.addf %8, %9 : vector<8x128xf32>
    %cst_7 = arith.constant dense<0.000000e+00> : vector<8xf32>
    %11 = vector.multi_reduction <add>, %10, %cst_7 [1] : vector<8x128xf32> to vector<8xf32>
    %12 = vector.shape_cast %11 : vector<8xf32> to vector<8x1xf32>
    %cst_8 = arith.constant 3.125000e-02 : f32
    %13 = vector.broadcast %cst_8 : f32 to vector<8x1xf32>
    %14 = arith.mulf %12, %13 : vector<8x1xf32>
    %15 = vector.broadcast %14 : vector<8x1xf32> to vector<8x128xf32>
    %16 = arith.subf %10, %15 : vector<8x128xf32>
    %17 = tpu.iota {dimensions = array<i32: 1>} : vector<8x128xi32>
    %c32_i32 = arith.constant 32 : i32
    %18 = vector.broadcast %c32_i32 : i32 to vector<8x128xi32>
    %19 = arith.cmpi slt, %17, %18 : vector<8x128xi32>
    %cst_9 = arith.constant 0.000000e+00 : f32
    %20 = vector.broadcast %cst_9 : f32 to vector<8x128xf32>
    %21 = arith.select %19, %16, %20 : vector<8x128xi1>, vector<8x128xf32>
    %22 = arith.mulf %21, %21 : vector<8x128xf32>
    %cst_10 = arith.constant dense<0.000000e+00> : vector<8xf32>
    %23 = vector.multi_reduction <add>, %22, %cst_10 [1] : vector<8x128xf32> to vector<8xf32>
    %24 = vector.shape_cast %23 : vector<8xf32> to vector<8x1xf32>
    %cst_11 = arith.constant 3.125000e-02 : f32
    %25 = vector.broadcast %cst_11 : f32 to vector<8x1xf32>
    %26 = arith.mulf %24, %25 : vector<8x1xf32>
    %cst_12 = arith.constant 9.99999996E-13 : f32
    %27 = vector.broadcast %cst_12 : f32 to vector<8x1xf32>
    %28 = arith.addf %26, %27 : vector<8x1xf32>
    %29 = math.rsqrt %28 : vector<8x1xf32>
    %30 = vector.broadcast %29 : vector<8x1xf32> to vector<8x128xf32>
    %31 = arith.mulf %21, %30 : vector<8x128xf32>
    %32 = vector.broadcast %2 : vector<1x128xf32> to vector<8x128xf32>
    %33 = arith.mulf %32, %31 : vector<8x128xf32>
    %34 = vector.broadcast %3 : vector<1x128xf32> to vector<8x128xf32>
    %35 = arith.addf %33, %34 : vector<8x128xf32>
    %c0_13 = arith.constant 0 : index
    %c0_14 = arith.constant 0 : index
    %36 = vector.load %arg5[%c0_13, %c0_14] : memref<8x128xf32, #tpu.memory_space<vmem>>, vector<8x128xf32>
    tpu.vector_store %arg5[%c0_13, %c0_14], %35 {strides = array<i32>} : memref<8x128xf32, #tpu.memory_space<vmem>>, vector<8x128xf32>,
    return
  }
  func.func @transform_0(%arg0: i32) -> (i32, i32) {
    %c0_i32 = arith.constant 0 : i32
    %c0_i32_0 = arith.constant 0 : i32
    return %arg0, %c0_i32 : i32, i32
  }
  func.func @transform_1(%arg0: i32) -> (i32, i32) {
    %c0_i32 = arith.constant 0 : i32
    %c0_i32_0 = arith.constant 0 : i32
    return %arg0, %c0_i32 : i32, i32
  }
  func.func @transform_2(%arg0: i32) -> (i32, i32) {
    %c0_i32 = arith.constant 0 : i32
    %c0_i32_0 = arith.constant 0 : i32
    %c0_i32_1 = arith.constant 0 : i32
    return %c0_i32, %c0_i32_0 : i32, i32
  }
  func.func @transform_3(%arg0: i32) -> (i32, i32) {
    %c0_i32 = arith.constant 0 : i32
    %c0_i32_0 = arith.constant 0 : i32
    %c0_i32_1 = arith.constant 0 : i32
    return %c0_i32, %c0_i32_0 : i32, i32
  }
  func.func @transform_4(%arg0: i32) -> (i32, i32) {
    %c0_i32 = arith.constant 0 : i32
    %c0_i32_0 = arith.constant 0 : i32
    return %arg0, %c0_i32 : i32, i32
  }
}

module attributes {stable_mosaic.version = 11 : i64} {
  func.func @_output_kernel(%arg0: i32, %arg1: memref<8x64xf32, #tpu.memory_space<vmem>>, %arg2: memref<8x128xf32, #tpu.memory_space<vmem>>, %arg3: memref<64x128xf32, #tpu.memory_space<vmem>>, %arg4: memref<3x128xf32, #tpu.memory_space<vmem>>, %arg5: memref<8x128xf32, #tpu.memory_space<vmem>>) attributes {dimension_semantics = [#tpu.dimension_semantics<parallel>], iteration_bounds = array<i64: 2>, scalar_prefetch = 0 : i64, scratch_operands = 0 : i64, tpu.core_type = #tpu.core_type<tc>, window_params = [{transform_indices = @transform_0, window_bounds = array<i64: 8, 64>}, {transform_indices = @transform_1, window_bounds = array<i64: 8, 128>}, {pipeline_mode = #tpu.pipeline_mode<synchronous>, transform_indices = @transform_2, window_bounds = array<i64: 64, 128>}, {pipeline_mode = #tpu.pipeline_mode<synchronous>, transform_indices = @transform_3, window_bounds = array<i64: 3, 128>}, {transform_indices = @transform_4, window_bounds = array<i64: 8, 128>}]} {
    %c0 = arith.constant 0 : index
    %c0_0 = arith.constant 0 : index
    %0 = vector.load %arg4[%c0, %c0_0] : memref<3x128xf32, #tpu.memory_space<vmem>>, vector<3x128xf32>
    %1 = vector.extract_strided_slice %0 {offsets = [0, 0], sizes = [1, 128], strides = [1, 1]} : vector<3x128xf32> to vector<1x128xf32>
    %2 = vector.extract_strided_slice %0 {offsets = [1, 0], sizes = [1, 128], strides = [1, 1]} : vector<3x128xf32> to vector<1x128xf32>
    %3 = vector.extract_strided_slice %0 {offsets = [2, 0], sizes = [1, 128], strides = [1, 1]} : vector<3x128xf32> to vector<1x128xf32>
    %c0_1 = arith.constant 0 : index
    %c0_2 = arith.constant 0 : index
    %4 = vector.load %arg1[%c0_1, %c0_2] : memref<8x64xf32, #tpu.memory_space<vmem>>, vector<8x64xf32>
    %c0_3 = arith.constant 0 : index
    %c0_4 = arith.constant 0 : index
    %5 = vector.load %arg3[%c0_3, %c0_4] : memref<64x128xf32, #tpu.memory_space<vmem>>, vector<64x128xf32>
    %cst = arith.constant dense<0.000000e+00> : vector<8x128xf32>
    %6 = tpu.matmul %4, %5, %cst {dimension_numbers = #tpu.dot_dimension_numbers<[1], [0], [0], [1], [0, 0, 1, 1], [], []>} : vector<8x64xf32>, vector<64x128xf32>, vector<8x128xf32> -> vector<8x128xf32>
    %7 = vector.broadcast %1 : vector<1x128xf32> to vector<8x128xf32>
    %8 = arith.addf %6, %7 : vector<8x128xf32>
    %c0_5 = arith.constant 0 : index
    %c0_6 = arith.constant 0 : index
    %9 = vector.load %arg2[%c0_5, %c0_6] : memref<8x128xf32, #tpu.memory_space<vmem>>, vector<8x128xf32>
    %10 = arith.addf %8, %9 : vector<8x128xf32>
    %cst_7 = arith.constant dense<0.000000e+00> : vector<8xf32>
    %11 = vector.multi_reduction <add>, %10, %cst_7 [1] : vector<8x128xf32> to vector<8xf32>
    %12 = vector.shape_cast %11 : vector<8xf32> to vector<8x1xf32>
    %cst_8 = arith.constant 3.125000e-02 : f32
    %13 = vector.broadcast %cst_8 : f32 to vector<8x1xf32>
    %14 = arith.mulf %12, %13 : vector<8x1xf32>
    %15 = vector.broadcast %14 : vector<8x1xf32> to vector<8x128xf32>
    %16 = arith.subf %10, %15 : vector<8x128xf32>
    %17 = tpu.iota {dimensions = array<i32: 1>} : vector<8x128xi32>
    %c32_i32 = arith.constant 32 : i32
    %18 = vector.broadcast %c32_i32 : i32 to vector<8x128xi32>
    %19 = arith.cmpi slt, %17, %18 : vector<8x128xi32>
    %cst_9 = arith.constant 0.000000e+00 : f32
    %20 = vector.broadcast %cst_9 : f32 to vector<8x128xf32>
    %21 = arith.select %19, %16, %20 : vector<8x128xi1>, vector<8x128xf32>
    %22 = arith.mulf %21, %21 : vector<8x128xf32>
    %cst_10 = arith.constant dense<0.000000e+00> : vector<8xf32>
    %23 = vector.multi_reduction <add>, %22, %cst_10 [1] : vector<8x128xf32> to vector<8xf32>
    %24 = vector.shape_cast %23 : vector<8xf32> to vector<8x1xf32>
    %cst_11 = arith.constant 3.125000e-02 : f32
    %25 = vector.broadcast %cst_11 : f32 to vector<8x1xf32>
    %26 = arith.mulf %24, %25 : vector<8x1xf32>
    %cst_12 = arith.constant 9.99999996E-13 : f32
    %27 = vector.broadcast %cst_12 : f32 to vector<8x1xf32>
    %28 = arith.addf %26, %27 : vector<8x1xf32>
    %29 = math.rsqrt %28 : vector<8x1xf32>
    %30 = vector.broadcast %29 : vector<8x1xf32> to vector<8x128xf32>
    %31 = arith.mulf %21, %30 : vector<8x128xf32>
    %32 = vector.broadcast %2 : vector<1x128xf32> to vector<8x128xf32>
    %33 = arith.mulf %32, %31 : vector<8x128xf32>
    %34 = vector.broadcast %3 : vector<1x128xf32> to vector<8x128xf32>
    %35 = arith.addf %33, %34 : vector<8x128xf32>
    %c0_13 = arith.constant 0 : index
    %c0_14 = arith.constant 0 : index
    %36 = vector.load %arg5[%c0_13, %c0_14] : memref<8x128xf32, #tpu.memory_space<vmem>>, vector<8x128xf32>
    tpu.vector_store %arg5[%c0_13, %c0_14], %35 {strides = array<i32>} : memref<8x128xf32, #tpu.memory_space<vmem>>, vector<8x128xf32>,
    return
  }
  func.func @transform_0(%arg0: i32) -> (i32, i32) {
    %c0_i32 = arith.constant 0 : i32
    %c0_i32_0 = arith.constant 0 : i32
    return %arg0, %c0_i32 : i32, i32
  }
  func.func @transform_1(%arg0: i32) -> (i32, i32) {
    %c0_i32 = arith.constant 0 : i32
    %c0_i32_0 = arith.constant 0 : i32
    return %arg0, %c0_i32 : i32, i32
  }
  func.func @transform_2(%arg0: i32) -> (i32, i32) {
    %c0_i32 = arith.constant 0 : i32
    %c0_i32_0 = arith.constant 0 : i32
    %c0_i32_1 = arith.constant 0 : i32
    return %c0_i32, %c0_i32_0 : i32, i32
  }
  func.func @transform_3(%arg0: i32) -> (i32, i32) {
    %c0_i32 = arith.constant 0 : i32
    %c0_i32_0 = arith.constant 0 : i32
    %c0_i32_1 = arith.constant 0 : i32
    return %c0_i32, %c0_i32_0 : i32, i32
  }
  func.func @transform_4(%arg0: i32) -> (i32, i32) {
    %c0_i32 = arith.constant 0 : i32
    %c0_i32_0 = arith.constant 0 : i32
    return %arg0, %c0_i32 : i32, i32
  }
}

</mosaic_0001>

<llo_original>
// kernel: tpu_custom_call.1
$region0: #{tpu_custom_call.1}
  #allocation0 [shape = 'u32[]', space=smem, size = 0x4, offset = 0x4, fixed_abs, tag = 'smem constant byte address 0x4 - core index']
  #allocation1 [shape = 'u32[144,128]{1,0:T(1,128)}', space=vmem, size = 0x12000, scoped, tag = 'internal scratch']
  %s0 = inlined_call_operand.hbm [shape: f32[16,64], index: 0, kind: input, shape index: {}]
  %s1 = inlined_call_operand.hbm [shape: f32[16,128], index: 1, kind: input, shape index: {}]
  %s2 = inlined_call_operand.hbm [shape: f32[64,128], index: 2, kind: input, shape index: {}]
  %s3 = inlined_call_operand.vmem [shape: f32[3,128], index: 3, kind: input, shape index: {}]
  %s4 = inlined_call_operand.hbm [shape: f32[16,128], index: 4, kind: output, shape index: {}]
  %s5 = sld [smem:[#allocation0]]
  $region61: #{tpu_custom_call.1} parent=0
    _
  %s7 = ssub.s32 1, %s5
  %s8 = scalar_select 0, %s7, %s5
  $region1: #{tpu_custom_call.1} parent=0
    #allocation2 [shape = 'u8[8192]{0}', space=vmem, size = 0x2000, scoped, tag = 'input window, operand 0']
    #allocation3 [shape = 's32[2]{0}', space=sflag, size = 0x8, scoped, tag = 'scoped memory for tpu_custom_call.1']
    #allocation4 [shape = 's32[2]{0}', space=sflag, size = 0x8, scoped, tag = 'scoped memory for tpu_custom_call.1']
    #allocation5 [shape = 'u8[8192]{0}', space=vmem, size = 0x2000, scoped, tag = 'input window, operand 1']
    #allocation6 [shape = 's32[2]{0}', space=sflag, size = 0x8, scoped, tag = 'scoped memory for tpu_custom_call.1']
    #allocation7 [shape = 'u8[32768]{0}', space=vmem, size = 0x8000, scoped, tag = 'input window, operand 2, single buffered']
    #allocation8 [shape = 'u8[8192]{0}', space=vmem, size = 0x2000, scoped, tag = 'output window, operand 0']
    %9 = vsyncpa [#allocation3], 0
    %s10 = scalar_lea.sflag [#allocation3], 1
    %11 = vsyncpa %s10, 0
    %12 = vsyncpa [#allocation6], 0
    %s13 = scalar_lea.sflag [#allocation6], 1
    %14 = vsyncpa %s13, 0
    %15 = vsyncpa [#allocation4], 0
    %s16 = scalar_lea.sflag [#allocation4], 1
    %17 = vsyncpa %s16, 0
    loop: start=0, step=1, limit=4
    $region2: #{tpu_custom_call.1} parent=1 // loop_pre_header
      _
    $region3: #{tpu_custom_call.1} parent=1 // loop_header
      %s19 = sphi 0, %s23
      %p20 = scmp.ge.s32.totalorder %s19, 4
      %s29 = sphi 0, %s31
      %s32 = sphi 0, %s29
      %s33 = sphi 0, %s32
      %s49 = sphi 0, %s33
      %s55 = sphi 0, %s57
      %s58 = sphi 0, %s55
      %s59 = sphi 0, %s58
      %s75 = sphi 0, %s59
      %s79 = sphi 0, %s79
      %s81 = sphi 0, %s79
      %s82 = sphi 0, %s81
      %s96 = sphi 0, %s82
      %s100 = sphi 0, %s100
      %s102 = sphi 0, %s100
      %s103 = sphi 0, %s102
      %s117 = sphi 0, %s103
      %s123 = sphi 0, %s125
      %s126 = sphi 0, %s123
      %s127 = sphi 0, %s126
      %s143 = sphi 0, %s127
    $region4: #{tpu_custom_call.1} parent=1 // loop_header_branch
      %22 = sbr.rel (%p20) target = $region8
    $region5: #{tpu_custom_call.1} parent=1 // loop_body
      %s24 = ssub.s32 %s19, 1
      %s25 = ssub.s32 %s19, 2
      %s26 = sadd.s32 %s19, 1
      %s27 = ssub.s32 %s19, %s26
      %p28 = scmp.eq.s32.totalorder %s27, 0
      %s30 = sadd.s32 %s29, 1
      %s31 = scalar_select %p28, %s29, %s30
      %p34 = pneg %p28
      %p35 = scmp.eq.s32.totalorder %s19, 1
      %p36 = por %p34, %p35
      %p37 = scmp.ne.s32.totalorder %s29, %s32
      %p38 = scmp.eq.s32.totalorder %s19, 0
      %p39 = por %p37, %p38
      %p40 = scmp.ne.s32.totalorder %s29, %s32
      %p41 = scmp.eq.s32.totalorder %s24, 1
      %p42 = por %p40, %p41
      %p43 = scmp.ne.s32.totalorder %s32, %s33
      %p44 = scmp.eq.s32.totalorder %s24, 0
      %p45 = por %p43, %p44
      %p46 = scmp.ne.s32.totalorder %s32, %s33
      %p47 = scmp.eq.s32.totalorder %s25, 1
      %p48 = por %p46, %p47
      %p50 = scmp.ne.s32.totalorder %s33, %s49
      %p51 = scmp.eq.s32.totalorder %s25, 0
      %p52 = por %p50, %p51
      %s53 = ssub.s32 %s19, %s26
      %p54 = scmp.eq.s32.totalorder %s53, 0
      %s56 = sadd.s32 %s55, 1
      %s57 = scalar_select %p54, %s55, %s56
      %p60 = pneg %p54
      %p61 = scmp.eq.s32.totalorder %s19, 1
      %p62 = por %p60, %p61
      %p63 = scmp.ne.s32.totalorder %s55, %s58
      %p64 = scmp.eq.s32.totalorder %s19, 0
      %p65 = por %p63, %p64
      %p66 = scmp.ne.s32.totalorder %s55, %s58
      %p67 = scmp.eq.s32.totalorder %s24, 1
      %p68 = por %p66, %p67
      %p69 = scmp.ne.s32.totalorder %s58, %s59
      %p70 = scmp.eq.s32.totalorder %s24, 0
      %p71 = por %p69, %p70
      %p72 = scmp.ne.s32.totalorder %s58, %s59
      %p73 = scmp.eq.s32.totalorder %s25, 1
      %p74 = por %p72, %p73
      %p76 = scmp.ne.s32.totalorder %s59, %s75
      %p77 = scmp.eq.s32.totalorder %s25, 0
      %p78 = por %p76, %p77
      %s80 = sadd.s32 %s79, 1
      %p83 = scmp.eq.s32.totalorder %s19, 1
      %p84 = scmp.ne.s32.totalorder %s79, %s81
      %p85 = scmp.eq.s32.totalorder %s19, 0
      %p86 = por %p84, %p85
      %p87 = scmp.ne.s32.totalorder %s79, %s81
      %p88 = scmp.eq.s32.totalorder %s24, 1
      %p89 = por %p87, %p88
      %p90 = scmp.ne.s32.totalorder %s81, %s82
      %p91 = scmp.eq.s32.totalorder %s24, 0
      %p92 = por %p90, %p91
      %p93 = scmp.ne.s32.totalorder %s81, %s82
      %p94 = scmp.eq.s32.totalorder %s25, 1
      %p95 = por %p93, %p94
      %p97 = scmp.ne.s32.totalorder %s82, %s96
      %p98 = scmp.eq.s32.totalorder %s25, 0
      %p99 = por %p97, %p98
      %s101 = sadd.s32 %s100, 1
      %p104 = scmp.eq.s32.totalorder %s19, 1
      %p105 = scmp.ne.s32.totalorder %s100, %s102
      %p106 = scmp.eq.s32.totalorder %s19, 0
      %p107 = por %p105, %p106
      %p108 = scmp.ne.s32.totalorder %s100, %s102
      %p109 = scmp.eq.s32.totalorder %s24, 1
      %p110 = por %p108, %p109
      %p111 = scmp.ne.s32.totalorder %s102, %s103
      %p112 = scmp.eq.s32.totalorder %s24, 0
      %p113 = por %p111, %p112
      %p114 = scmp.ne.s32.totalorder %s102, %s103
      %p115 = scmp.eq.s32.totalorder %s25, 1
      %p116 = por %p114, %p115
      %p118 = scmp.ne.s32.totalorder %s103, %s117
      %p119 = scmp.eq.s32.totalorder %s25, 0
      %p120 = por %p118, %p119
      %s121 = ssub.s32 %s19, %s26
      %p122 = scmp.eq.s32.totalorder %s121, 0
      %s124 = sadd.s32 %s123, 1
      %s125 = scalar_select %p122, %s123, %s124
      %p128 = pneg %p122
      %p129 = scmp.eq.s32.totalorder %s19, 1
      %p130 = por %p128, %p129
      %p131 = scmp.ne.s32.totalorder %s123, %s126
      %p132 = scmp.eq.s32.totalorder %s19, 0
      %p133 = por %p131, %p132
      %p134 = scmp.ne.s32.totalorder %s123, %s126
      %p135 = scmp.eq.s32.totalorder %s24, 1
      %p136 = por %p134, %p135
      %p137 = scmp.ne.s32.totalorder %s126, %s127
      %p138 = scmp.eq.s32.totalorder %s24, 0
      %p139 = por %p137, %p138
      %p140 = scmp.ne.s32.totalorder %s126, %s127
      %p141 = scmp.eq.s32.totalorder %s25, 1
      %p142 = por %p140, %p141
      %p144 = scmp.ne.s32.totalorder %s127, %s143
      %p145 = scmp.eq.s32.totalorder %s25, 0
      %p146 = por %p144, %p145
      %p147 = scmp.le.s32.totalorder 1, %s19
      %p148 = scmp.lt.s32.totalorder %s19, 3
      %p149 = pnand %p147, %p148
      %p150 = pneg %p149
      // Predicated region
      $region9: #{tpu_custom_call.1} parent=5 // pred_check
        _
      $region10: #{tpu_custom_call.1} parent=5 // pred_check_branch
        %152 = sbr.rel (%p149) target = $region12
      $region11: #{tpu_custom_call.1} parent=5 // pred_region
        %s153 = ssub.s32 %s19, 1
        // Predicated region
        $region13: #{tpu_custom_call.1} parent=11 // pred_check
          %p154 = pneg %p92
        $region14: #{tpu_custom_call.1} parent=11 // pred_check_branch
          %156 = sbr.rel (%p154) target = $region16
        $region15: #{tpu_custom_call.1} parent=11 // pred_region
          %s158 = ssub.s32 1024, 1024
          %159 = vsyncadd [#allocation6], %s158
          %s160 = sshll.u32 [#allocation7], 4
          %s161 = int_to_ptr.vmem [resolvable:$true] %s160
          %166 = dma.hbm_to_vmem [thread:$0]  %s2, 1024, %s161, [#allocation6], 128, 128, 8
        $region16: #{tpu_custom_call.1} parent=11 // pred_fallthru
          _
        // Predicated region
        $region17: #{tpu_custom_call.1} parent=11 // pred_check
          %p167 = pneg %p113
        $region18: #{tpu_custom_call.1} parent=11 // pred_check_branch
          %169 = sbr.rel (%p167) target = $region20
        $region19: #{tpu_custom_call.1} parent=11 // pred_region
          _
        $region20: #{tpu_custom_call.1} parent=11 // pred_fallthru
          _
      $region12: #{tpu_custom_call.1} parent=5 // pred_fallthru
        _
      %p170 = scmp.lt.s32.totalorder %s19, 2
      // Predicated region
      $region21: #{tpu_custom_call.1} parent=5 // pred_check
        %p171 = pneg %p170
      $region22: #{tpu_custom_call.1} parent=5 // pred_check_branch
        %173 = sbr.rel (%p171) target = $region24
      $region23: #{tpu_custom_call.1} parent=5 // pred_region
        // Predicated region
        $region25: #{tpu_custom_call.1} parent=23 // pred_check
          %p174 = pneg %p39
        $region26: #{tpu_custom_call.1} parent=23 // pred_check_branch
          %176 = sbr.rel (%p174) target = $region28
        $region27: #{tpu_custom_call.1} parent=23 // pred_region
          %s177 = sand.u32 %s29, 1
          %s178 = scalar_lea.sflag [#allocation3], %s177
          %s179 = sand.u32 %s29, 1
          %s180 = smul.addr %s179, 8
          %s181 = scalar_lea.vmem [#allocation2], %s180
          %s183 = ssub.s32 128, 128
          %184 = vsyncadd %s178, %s183
          %s185 = smul.addr %s19, 128
          %s186 = scalar_lea.hbm %s0, %s185
          %s188 = sshll.u32 %s181, 4
          %s189 = int_to_ptr.vmem [resolvable:$true] %s188
          %191 = dma.hbm_to_vmem [thread:$0]  %s186, 128, %s189, %s178
        $region28: #{tpu_custom_call.1} parent=23 // pred_fallthru
          _
        // Predicated region
        $region29: #{tpu_custom_call.1} parent=23 // pred_check
          %p192 = pneg %p65
        $region30: #{tpu_custom_call.1} parent=23 // pred_check_branch
          %194 = sbr.rel (%p192) target = $region32
        $region31: #{tpu_custom_call.1} parent=23 // pred_region
          %s195 = sand.u32 %s19, 1
          %s196 = scalar_lea.sflag [#allocation6], %s195
          %s197 = sand.u32 %s55, 1
          %s198 = smul.addr %s197, 8
          %s199 = scalar_lea.vmem [#allocation5], %s198
          %s201 = ssub.s32 128, 128
          %202 = vsyncadd %s196, %s201
          %s203 = smul.addr %s19, 128
          %s204 = scalar_lea.hbm %s1, %s203
          %s206 = sshll.u32 %s199, 4
          %s207 = int_to_ptr.vmem [resolvable:$true] %s206
          %209 = dma.hbm_to_vmem [thread:$0]  %s204, 128, %s207, %s196
        $region32: #{tpu_custom_call.1} parent=23 // pred_fallthru
          _
      $region24: #{tpu_custom_call.1} parent=5 // pred_fallthru
        _
      %p210 = scmp.le.s32.totalorder 1, %s19
      %p211 = scmp.lt.s32.totalorder %s19, 3
      %p212 = pnand %p210, %p211
      %p213 = pneg %p212
      // Predicated region
      $region33: #{tpu_custom_call.1} parent=5 // pred_check
        _
      $region34: #{tpu_custom_call.1} parent=5 // pred_check_branch
        %215 = sbr.rel (%p212) target = $region36
      $region35: #{tpu_custom_call.1} parent=5 // pred_region
        %s216 = ssub.s32 %s19, 1
        %s217 = sand.u32 %s32, 1
        %s218 = scalar_lea.sflag [#allocation3], %s217
        %s219 = sand.u32 %s32, 1
        %s220 = smul.addr %s219, 8
        %s221 = scalar_lea.vmem [#allocation2], %s220
        // Predicated region
        $region37: #{tpu_custom_call.1} parent=35 // pred_check
          %p222 = pneg %p45
        $region38: #{tpu_custom_call.1} parent=35 // pred_check_branch
          %224 = sbr.rel (%p222) target = $region40
        $region39: #{tpu_custom_call.1} parent=35 // pred_region
          %225 = dma.done %s218, 128
        $region40: #{tpu_custom_call.1} parent=35 // pred_fallthru
          _
        %s226 = sand.u32 %s24, 1
        %s227 = scalar_lea.sflag [#allocation6], %s226
        %s228 = sand.u32 %s58, 1
        %s229 = smul.addr %s228, 8
        %s230 = scalar_lea.vmem [#allocation5], %s229
        // Predicated region
        $region41: #{tpu_custom_call.1} parent=35 // pred_check
          %p231 = pneg %p71
        $region42: #{tpu_custom_call.1} parent=35 // pred_check_branch
          %233 = sbr.rel (%p231) target = $region44
        $region43: #{tpu_custom_call.1} parent=35 // pred_region
          %234 = dma.done %s227, 128
        $region44: #{tpu_custom_call.1} parent=35 // pred_fallthru
          _
        // Predicated region
        $region45: #{tpu_custom_call.1} parent=35 // pred_check
          %p235 = pneg %p92
        $region46: #{tpu_custom_call.1} parent=35 // pred_check_branch
          %237 = sbr.rel (%p235) target = $region48
        $region47: #{tpu_custom_call.1} parent=35 // pred_region
          %238 = dma.done [#allocation6], 1024
        $region48: #{tpu_custom_call.1} parent=35 // pred_fallthru
          _
        %s239 = sand.u32 %s32, 1
        %s240 = scalar_lea.sflag [#allocation3], %s239
        %s241 = sand.u32 %s32, 1
        %s242 = smul.addr %s241, 8
        %s243 = scalar_lea.vmem [#allocation2], %s242
        %p244 = pneg %p45
        %p245 = pneg %p42
        %s246 = sand.u32 %s24, 1
        %s247 = scalar_lea.sflag [#allocation6], %s246
        %s248 = sand.u32 %s58, 1
        %s249 = smul.addr %s248, 8
        %s250 = scalar_lea.vmem [#allocation5], %s249
        %p251 = pneg %p71
        %p252 = pneg %p68
        %p253 = pneg %p92
        %p254 = pneg %p89
        %p255 = pneg %p113
        %p256 = pneg %p110
        %p257 = pneg %p139
        %p258 = pneg %p136
        %s259 = sand.u32 %s126, 1
        %s260 = scalar_lea.sflag [#allocation4], %s259
        %s261 = sand.u32 %s126, 1
        %s262 = smul.addr %s261, 8
        %s263 = scalar_lea.vmem [#allocation8], %s262
        %v264 = vld [vmem:[%s3] sm:$0x7]
        %v265 = vld [vmem:[%s221] sm:$0xff]
        %v266 = vld [vmem:[#allocation7] sm:$0xff]
        %v267 = vld [vmem:[#allocation7 + $0x8] sm:$0xff]
        %v268 = vld [vmem:[#allocation7 + $0x10] sm:$0xff]
        %v269 = vld [vmem:[#allocation7 + $0x18] sm:$0xff]
        %v270 = vld [vmem:[#allocation7 + $0x20] sm:$0xff]
        %v271 = vld [vmem:[#allocation7 + $0x28] sm:$0xff]
        %v272 = vld [vmem:[#allocation7 + $0x30] sm:$0xff]
        %v273 = vld [vmem:[#allocation7 + $0x38] sm:$0xff]
        %v274 = vlaneseq
        %v275 = vshrl.u32 %v274, 7
        %v276 = vsub.s32 0, %v275
        %v277 = vrot.slane %v264, %v276
        %vm278 = vcmask 523264
        %v280 = vsel %vm278, %v265, 0
        %282 = vmatprep.subr.mxu0 0.0
        %283 = vmatpush1.msra.mxu0 %v266
        %284 = vmatprep.subr.mxu0 0.0
        %285 = vmatpush1.msra.mxu0 %v267
        %286 = vmatprep.subr.mxu0 0.0
        %287 = vmatpush1.msra.mxu0 %v268
        %288 = vmatprep.subr.mxu0 0.0
        %289 = vmatpush1.msra.mxu0 %v269
        %290 = vmatprep.subr.mxu0 0.0
        %291 = vmatpush1.msra.mxu0 %v270
        %292 = vmatprep.subr.mxu0 0.0
        %293 = vmatpush1.msra.mxu0 %v271
        %294 = vmatprep.subr.mxu0 0.0
        %295 = vmatpush1.msra.mxu0 %v272
        %296 = vmatprep.subr.mxu0 0.0
        %297 = vmatpush1.msra.mxu0 %v273
        %298 = vmatprep.subr.mxu0 0.0
        %299 = vmatpush1.msra.mxu0 0.0
        %300 = vmatprep.subr.mxu0 0.0
        %301 = vmatpush1.msra.mxu0 0.0
        %302 = vmatprep.subr.mxu0 0.0
        %303 = vmatpush1.msra.mxu0 0.0
        %304 = vmatprep.subr.mxu0 0.0
        %305 = vmatpush1.msra.mxu0 0.0
        %306 = vmatprep.subr.mxu0 0.0
        %307 = vmatpush1.msra.mxu0 0.0
        %308 = vmatprep.subr.mxu0 0.0
        %309 = vmatpush1.msra.mxu0 0.0
        %310 = vmatprep.subr.mxu0 0.0
        %311 = vmatpush1.msra.mxu0 0.0
        %312 = vmatprep.subr.mxu0 0.0
        %313 = vmatpush1.msra.mxu0 0.0
        %314 = vmatprep.subr.mxu0 0.0
        %315 = vmatpush1.msra.mxu0 0.0
        %316 = vmatprep.subr.mxu0 0.0
        %317 = vmatpush1.msra.mxu0 0.0
        %318 = vmatprep.subr.mxu0 0.0
        %319 = vmatpush1.msra.mxu0 0.0
        %320 = vmatprep.subr.mxu0 0.0
        %321 = vmatpush1.msra.mxu0 0.0
        %322 = vmatprep.subr.mxu0 0.0
        %323 = vmatpush1.msra.mxu0 0.0
        %324 = vmatprep.subr.mxu0 0.0
        %325 = vmatpush1.msra.mxu0 0.0
        %326 = vmatprep.subr.mxu0 0.0
        %327 = vmatpush1.msra.mxu0 0.0
        %328 = vmatprep.subr.mxu0 0.0
        %329 = vmatpush1.msra.mxu0 0.0
        %330 = vmatprep.subr.mxu0 0.0
        %331 = vmatpush1.msra.mxu0 0.0
        %332 = vmatprep.subr.mxu0 0.0
        %333 = vmatpush1.msra.mxu0 0.0
        %334 = vmatprep.subr.mxu0 0.0
        %335 = vmatpush1.msra.mxu0 0.0
        %336 = vmatprep.subr.mxu0 0.0
        %337 = vmatpush1.msra.mxu0 0.0
        %338 = vmatprep.subr.mxu0 0.0
        %339 = vmatpush1.msra.mxu0 0.0
        %340 = vmatprep.subr.mxu0 0.0
        %341 = vmatpush1.msra.mxu0 0.0
        %342 = vmatprep.subr.mxu0 0.0
        %343 = vmatpush1.msra.mxu0 0.0
        %344 = vmatprep.subr.mxu0 0.0
        %345 = vmatpush1.msra.mxu0 0.0
        %346 = vmatprep.mubr.f32.mxu0 0.0
        %347 = vmatmul.mubr.f32.gmra.mrb[0].mxu0 %v280
        %v348 = vpop.f32.mrb[0].mxu0
        %v349 = vadd.f32 %v277, %v348
        %v350 = vpop.f32.mrb[0].mxu0
        %351 = vdwg.mxu0
        %v352 = vld [vmem:[%s230] sm:$0xff]
        %v353 = vadd.f32 %v349, %v352
        %354 = vadd.xlane.f32.xlu0 %v353
        %v355 = vpop.xlane.xlu0 %354
        %v356 = vmul.f32 %v355, 0.03125
        %v357 = vsub.f32 %v353, %v356
        %v358 = vlaneseq
        %v359 = vand.u32 %v358, 127
        %vm360 = vcmp.lt.s32.totalorder %v359, 32
        %v361 = vsel %vm360, %v357, 0.0
        %v362 = vmul.f32 %v361, %v361
        %363 = vadd.xlane.f32.xlu0 %v362
        %v364 = vpop.xlane.xlu0 %363
        %v365 = vmul.f32 %v364, 0.03125
        %v366 = vadd.f32 %v365, 1e-12
        %v367 = vrsqrt.pop %v366
        %v368 = vmul.f32 %v361, %v367
        %v369 = vlaneseq
        %v370 = vshrl.u32 %v369, 7
        %v371 = vsub.s32 1, %v370
        %v372 = vrot.slane %v264, %v371
        %v373 = vmul.f32 %v372, %v368
        %v374 = vlaneseq
        %v375 = vshrl.u32 %v374, 7
        %v376 = vsub.s32 2, %v375
        %v377 = vrot.slane %v264, %v376
        %v378 = vadd.f32 %v373, %v377
        %379 = vst [vmem:[%s263] sm:$0xff] %v378
        %s380 = sand.u32 %s126, 1
        %s381 = scalar_lea.sflag [#allocation4], %s380
        %s382 = sand.u32 %s126, 1
        %s383 = smul.addr %s382, 8
        %s384 = scalar_lea.vmem [#allocation8], %s383
        // Predicated region
        $region49: #{tpu_custom_call.1} parent=35 // pred_check
          %p385 = pneg %p136
        $region50: #{tpu_custom_call.1} parent=35 // pred_check_branch
          %387 = sbr.rel (%p385) target = $region52
        $region51: #{tpu_custom_call.1} parent=35 // pred_region
          %s389 = ssub.s32 128, 128
          %390 = vsyncadd %s381, %s389
          %s391 = smul.addr %s24, 128
          %s392 = scalar_lea.hbm %s4, %s391
          %s394 = sshll.u32 %s384, 4
          %s395 = int_to_ptr.vmem [resolvable:$true] %s394
          %397 = dma.vmem_to_hbm [thread:$0]  %s395, 128, %s392, %s381
        $region52: #{tpu_custom_call.1} parent=35 // pred_fallthru
          _
      $region36: #{tpu_custom_call.1} parent=5 // pred_fallthru
        _
      %p398 = scmp.le.s32.totalorder 2, %s19
      // Predicated region
      $region53: #{tpu_custom_call.1} parent=5 // pred_check
        %p399 = pneg %p398
      $region54: #{tpu_custom_call.1} parent=5 // pred_check_branch
        %401 = sbr.rel (%p399) target = $region56
      $region55: #{tpu_custom_call.1} parent=5 // pred_region
        %s402 = ssub.s32 %s19, 2
        // Predicated region
        $region57: #{tpu_custom_call.1} parent=55 // pred_check
          %p403 = pneg %p142
        $region58: #{tpu_custom_call.1} parent=55 // pred_check_branch
          %405 = sbr.rel (%p403) target = $region60
        $region59: #{tpu_custom_call.1} parent=55 // pred_region
          %s406 = sand.u32 %s127, 1
          %s407 = scalar_lea.sflag [#allocation4], %s406
          %s408 = sand.u32 %s127, 1
          %s409 = smul.addr %s408, 8
          %s410 = scalar_lea.vmem [#allocation8], %s409
          %411 = dma.done %s407, 128
        $region60: #{tpu_custom_call.1} parent=55 // pred_fallthru
          _
      $region56: #{tpu_custom_call.1} parent=5 // pred_fallthru
        _
    $region6: #{tpu_custom_call.1} parent=1 // loop_footer
      %s23 = sadd.s32 1, %s19
    $region7: #{tpu_custom_call.1} parent=1 // loop_footer_branch
      %18 = sbr.rel target = $region3
    $region8: #{tpu_custom_call.1} parent=1 // loop_exit
      _
    %412 = vsyncpa [#allocation3], 1
    %s413 = scalar_lea.sflag [#allocation3], 1
    %414 = vsyncpa %s413, 1
    %415 = vsyncpa [#allocation6], 1
    %s416 = scalar_lea.sflag [#allocation6], 1
    %417 = vsyncpa %s416, 1
    %418 = vsyncpa [#allocation4], 1
    %s419 = scalar_lea.sflag [#allocation4], 1
    %420 = vsyncpa %s419, 1

// kernel: tpu_custom_call.1
$region0: #{tpu_custom_call.1}
  #allocation0 [shape = 'u32[]', space=smem, size = 0x4, offset = 0x4, fixed_abs, tag = 'smem constant byte address 0x4 - core index']
  #allocation1 [shape = 'u32[144,128]{1,0:T(1,128)}', space=vmem, size = 0x12000, scoped, tag = 'internal scratch']
  %s0 = inlined_call_operand.hbm [shape: f32[16,64], index: 0, kind: input, shape index: {}]
  %s1 = inlined_call_operand.hbm [shape: f32[16,128], index: 1, kind: input, shape index: {}]
  %s2 = inlined_call_operand.hbm [shape: f32[64,128], index: 2, kind: input, shape index: {}]
  %s3 = inlined_call_operand.vmem [shape: f32[3,128], index: 3, kind: input, shape index: {}]
  %s4 = inlined_call_operand.hbm [shape: f32[16,128], index: 4, kind: output, shape index: {}]
  %s5 = sld [smem:[#allocation0]]
  $region61: #{tpu_custom_call.1} parent=0
    _
  %s7 = ssub.s32 1, %s5
  %s8 = scalar_select 0, %s7, %s5
  $region1: #{tpu_custom_call.1} parent=0
    #allocation2 [shape = 'u8[8192]{0}', space=vmem, size = 0x2000, scoped, tag = 'input window, operand 0']
    #allocation3 [shape = 's32[2]{0}', space=sflag, size = 0x8, scoped, tag = 'scoped memory for tpu_custom_call.1']
    #allocation4 [shape = 's32[2]{0}', space=sflag, size = 0x8, scoped, tag = 'scoped memory for tpu_custom_call.1']
    #allocation5 [shape = 'u8[8192]{0}', space=vmem, size = 0x2000, scoped, tag = 'input window, operand 1']
    #allocation6 [shape = 's32[2]{0}', space=sflag, size = 0x8, scoped, tag = 'scoped memory for tpu_custom_call.1']
    #allocation7 [shape = 'u8[32768]{0}', space=vmem, size = 0x8000, scoped, tag = 'input window, operand 2, single buffered']
    #allocation8 [shape = 'u8[8192]{0}', space=vmem, size = 0x2000, scoped, tag = 'output window, operand 0']
    %9 = vsyncpa [#allocation3], 0
    %s10 = scalar_lea.sflag [#allocation3], 1
    %11 = vsyncpa %s10, 0
    %12 = vsyncpa [#allocation6], 0
    %s13 = scalar_lea.sflag [#allocation6], 1
    %14 = vsyncpa %s13, 0
    %15 = vsyncpa [#allocation4], 0
    %s16 = scalar_lea.sflag [#allocation4], 1
    %17 = vsyncpa %s16, 0
    loop: start=0, step=1, limit=4
    $region2: #{tpu_custom_call.1} parent=1 // loop_pre_header
      _
    $region3: #{tpu_custom_call.1} parent=1 // loop_header
      %s19 = sphi 0, %s23
      %p20 = scmp.ge.s32.totalorder %s19, 4
      %s29 = sphi 0, %s31
      %s32 = sphi 0, %s29
      %s33 = sphi 0, %s32
      %s49 = sphi 0, %s33
      %s55 = sphi 0, %s57
      %s58 = sphi 0, %s55
      %s59 = sphi 0, %s58
      %s75 = sphi 0, %s59
      %s79 = sphi 0, %s79
      %s81 = sphi 0, %s79
      %s82 = sphi 0, %s81
      %s96 = sphi 0, %s82
      %s100 = sphi 0, %s100
      %s102 = sphi 0, %s100
      %s103 = sphi 0, %s102
      %s117 = sphi 0, %s103
      %s123 = sphi 0, %s125
      %s126 = sphi 0, %s123
      %s127 = sphi 0, %s126
      %s143 = sphi 0, %s127
    $region4: #{tpu_custom_call.1} parent=1 // loop_header_branch
      %22 = sbr.rel (%p20) target = $region8
    $region5: #{tpu_custom_call.1} parent=1 // loop_body
      %s24 = ssub.s32 %s19, 1
      %s25 = ssub.s32 %s19, 2
      %s26 = sadd.s32 %s19, 1
      %s27 = ssub.s32 %s19, %s26
      %p28 = scmp.eq.s32.totalorder %s27, 0
      %s30 = sadd.s32 %s29, 1
      %s31 = scalar_select %p28, %s29, %s30
      %p34 = pneg %p28
      %p35 = scmp.eq.s32.totalorder %s19, 1
      %p36 = por %p34, %p35
      %p37 = scmp.ne.s32.totalorder %s29, %s32
      %p38 = scmp.eq.s32.totalorder %s19, 0
      %p39 = por %p37, %p38
      %p40 = scmp.ne.s32.totalorder %s29, %s32
      %p41 = scmp.eq.s32.totalorder %s24, 1
      %p42 = por %p40, %p41
      %p43 = scmp.ne.s32.totalorder %s32, %s33
      %p44 = scmp.eq.s32.totalorder %s24, 0
      %p45 = por %p43, %p44
      %p46 = scmp.ne.s32.totalorder %s32, %s33
      %p47 = scmp.eq.s32.totalorder %s25, 1
      %p48 = por %p46, %p47
      %p50 = scmp.ne.s32.totalorder %s33, %s49
      %p51 = scmp.eq.s32.totalorder %s25, 0
      %p52 = por %p50, %p51
      %s53 = ssub.s32 %s19, %s26
      %p54 = scmp.eq.s32.totalorder %s53, 0
      %s56 = sadd.s32 %s55, 1
      %s57 = scalar_select %p54, %s55, %s56
      %p60 = pneg %p54
      %p61 = scmp.eq.s32.totalorder %s19, 1
      %p62 = por %p60, %p61
      %p63 = scmp.ne.s32.totalorder %s55, %s58
      %p64 = scmp.eq.s32.totalorder %s19, 0
      %p65 = por %p63, %p64
      %p66 = scmp.ne.s32.totalorder %s55, %s58
      %p67 = scmp.eq.s32.totalorder %s24, 1
      %p68 = por %p66, %p67
      %p69 = scmp.ne.s32.totalorder %s58, %s59
      %p70 = scmp.eq.s32.totalorder %s24, 0
      %p71 = por %p69, %p70
      %p72 = scmp.ne.s32.totalorder %s58, %s59
      %p73 = scmp.eq.s32.totalorder %s25, 1
      %p74 = por %p72, %p73
      %p76 = scmp.ne.s32.totalorder %s59, %s75
      %p77 = scmp.eq.s32.totalorder %s25, 0
      %p78 = por %p76, %p77
      %s80 = sadd.s32 %s79, 1
      %p83 = scmp.eq.s32.totalorder %s19, 1
      %p84 = scmp.ne.s32.totalorder %s79, %s81
      %p85 = scmp.eq.s32.totalorder %s19, 0
      %p86 = por %p84, %p85
      %p87 = scmp.ne.s32.totalorder %s79, %s81
      %p88 = scmp.eq.s32.totalorder %s24, 1
      %p89 = por %p87, %p88
      %p90 = scmp.ne.s32.totalorder %s81, %s82
      %p91 = scmp.eq.s32.totalorder %s24, 0
      %p92 = por %p90, %p91
      %p93 = scmp.ne.s32.totalorder %s81, %s82
      %p94 = scmp.eq.s32.totalorder %s25, 1
      %p95 = por %p93, %p94
      %p97 = scmp.ne.s32.totalorder %s82, %s96
      %p98 = scmp.eq.s32.totalorder %s25, 0
      %p99 = por %p97, %p98
      %s101 = sadd.s32 %s100, 1
      %p104 = scmp.eq.s32.totalorder %s19, 1
      %p105 = scmp.ne.s32.totalorder %s100, %s102
      %p106 = scmp.eq.s32.totalorder %s19, 0
      %p107 = por %p105, %p106
      %p108 = scmp.ne.s32.totalorder %s100, %s102
      %p109 = scmp.eq.s32.totalorder %s24, 1
      %p110 = por %p108, %p109
      %p111 = scmp.ne.s32.totalorder %s102, %s103
      %p112 = scmp.eq.s32.totalorder %s24, 0
      %p113 = por %p111, %p112
      %p114 = scmp.ne.s32.totalorder %s102, %s103
      %p115 = scmp.eq.s32.totalorder %s25, 1
      %p116 = por %p114, %p115
      %p118 = scmp.ne.s32.totalorder %s103, %s117
      %p119 = scmp.eq.s32.totalorder %s25, 0
      %p120 = por %p118, %p119
      %s121 = ssub.s32 %s19, %s26
      %p122 = scmp.eq.s32.totalorder %s121, 0
      %s124 = sadd.s32 %s123, 1
      %s125 = scalar_select %p122, %s123, %s124
      %p128 = pneg %p122
      %p129 = scmp.eq.s32.totalorder %s19, 1
      %p130 = por %p128, %p129
      %p131 = scmp.ne.s32.totalorder %s123, %s126
      %p132 = scmp.eq.s32.totalorder %s19, 0
      %p133 = por %p131, %p132
      %p134 = scmp.ne.s32.totalorder %s123, %s126
      %p135 = scmp.eq.s32.totalorder %s24, 1
      %p136 = por %p134, %p135
      %p137 = scmp.ne.s32.totalorder %s126, %s127
      %p138 = scmp.eq.s32.totalorder %s24, 0
      %p139 = por %p137, %p138
      %p140 = scmp.ne.s32.totalorder %s126, %s127
      %p141 = scmp.eq.s32.totalorder %s25, 1
      %p142 = por %p140, %p141
      %p144 = scmp.ne.s32.totalorder %s127, %s143
      %p145 = scmp.eq.s32.totalorder %s25, 0
      %p146 = por %p144, %p145
      %p147 = scmp.le.s32.totalorder 1, %s19
      %p148 = scmp.lt.s32.totalorder %s19, 3
      %p149 = pnand %p147, %p148
      %p150 = pneg %p149
      // Predicated region
      $region9: #{tpu_custom_call.1} parent=5 // pred_check
        _
      $region10: #{tpu_custom_call.1} parent=5 // pred_check_branch
        %152 = sbr.rel (%p149) target = $region12
      $region11: #{tpu_custom_call.1} parent=5 // pred_region
        %s153 = ssub.s32 %s19, 1
        // Predicated region
        $region13: #{tpu_custom_call.1} parent=11 // pred_check
          %p154 = pneg %p92
        $region14: #{tpu_custom_call.1} parent=11 // pred_check_branch
          %156 = sbr.rel (%p154) target = $region16
        $region15: #{tpu_custom_call.1} parent=11 // pred_region
          %s158 = ssub.s32 1024, 1024
          %159 = vsyncadd [#allocation6], %s158
          %s160 = sshll.u32 [#allocation7], 4
          %s161 = int_to_ptr.vmem [resolvable:$true] %s160
          %166 = dma.hbm_to_vmem [thread:$0]  %s2, 1024, %s161, [#allocation6], 128, 128, 8
        $region16: #{tpu_custom_call.1} parent=11 // pred_fallthru
          _
        // Predicated region
        $region17: #{tpu_custom_call.1} parent=11 // pred_check
          %p167 = pneg %p113
        $region18: #{tpu_custom_call.1} parent=11 // pred_check_branch
          %169 = sbr.rel (%p167) target = $region20
        $region19: #{tpu_custom_call.1} parent=11 // pred_region
          _
        $region20: #{tpu_custom_call.1} parent=11 // pred_fallthru
          _
      $region12: #{tpu_custom_call.1} parent=5 // pred_fallthru
        _
      %p170 = scmp.lt.s32.totalorder %s19, 2
      // Predicated region
      $region21: #{tpu_custom_call.1} parent=5 // pred_check
        %p171 = pneg %p170
      $region22: #{tpu_custom_call.1} parent=5 // pred_check_branch
        %173 = sbr.rel (%p171) target = $region24
      $region23: #{tpu_custom_call.1} parent=5 // pred_region
        // Predicated region
        $region25: #{tpu_custom_call.1} parent=23 // pred_check
          %p174 = pneg %p39
        $region26: #{tpu_custom_call.1} parent=23 // pred_check_branch
          %176 = sbr.rel (%p174) target = $region28
        $region27: #{tpu_custom_call.1} parent=23 // pred_region
          %s177 = sand.u32 %s29, 1
          %s178 = scalar_lea.sflag [#allocation3], %s177
          %s179 = sand.u32 %s29, 1
          %s180 = smul.addr %s179, 8
          %s181 = scalar_lea.vmem [#allocation2], %s180
          %s183 = ssub.s32 128, 128
          %184 = vsyncadd %s178, %s183
          %s185 = smul.addr %s19, 128
          %s186 = scalar_lea.hbm %s0, %s185
          %s188 = sshll.u32 %s181, 4
          %s189 = int_to_ptr.vmem [resolvable:$true] %s188
          %191 = dma.hbm_to_vmem [thread:$0]  %s186, 128, %s189, %s178
        $region28: #{tpu_custom_call.1} parent=23 // pred_fallthru
          _
        // Predicated region
        $region29: #{tpu_custom_call.1} parent=23 // pred_check
          %p192 = pneg %p65
        $region30: #{tpu_custom_call.1} parent=23 // pred_check_branch
          %194 = sbr.rel (%p192) target = $region32
        $region31: #{tpu_custom_call.1} parent=23 // pred_region
          %s195 = sand.u32 %s19, 1
          %s196 = scalar_lea.sflag [#allocation6], %s195
          %s197 = sand.u32 %s55, 1
          %s198 = smul.addr %s197, 8
          %s199 = scalar_lea.vmem [#allocation5], %s198
          %s201 = ssub.s32 128, 128
          %202 = vsyncadd %s196, %s201
          %s203 = smul.addr %s19, 128
          %s204 = scalar_lea.hbm %s1, %s203
          %s206 = sshll.u32 %s199, 4
          %s207 = int_to_ptr.vmem [resolvable:$true] %s206
          %209 = dma.hbm_to_vmem [thread:$0]  %s204, 128, %s207, %s196
        $region32: #{tpu_custom_call.1} parent=23 // pred_fallthru
          _
      $region24: #{tpu_custom_call.1} parent=5 // pred_fallthru
        _
      %p210 = scmp.le.s32.totalorder 1, %s19
      %p211 = scmp.lt.s32.totalorder %s19, 3
      %p212 = pnand %p210, %p211
      %p213 = pneg %p212
      // Predicated region
      $region33: #{tpu_custom_call.1} parent=5 // pred_check
        _
      $region34: #{tpu_custom_call.1} parent=5 // pred_check_branch
        %215 = sbr.rel (%p212) target = $region36
      $region35: #{tpu_custom_call.1} parent=5 // pred_region
        %s216 = ssub.s32 %s19, 1
        %s217 = sand.u32 %s32, 1
        %s218 = scalar_lea.sflag [#allocation3], %s217
        %s219 = sand.u32 %s32, 1
        %s220 = smul.addr %s219, 8
        %s221 = scalar_lea.vmem [#allocation2], %s220
        // Predicated region
        $region37: #{tpu_custom_call.1} parent=35 // pred_check
          %p222 = pneg %p45
        $region38: #{tpu_custom_call.1} parent=35 // pred_check_branch
          %224 = sbr.rel (%p222) target = $region40
        $region39: #{tpu_custom_call.1} parent=35 // pred_region
          %225 = dma.done %s218, 128
        $region40: #{tpu_custom_call.1} parent=35 // pred_fallthru
          _
        %s226 = sand.u32 %s24, 1
        %s227 = scalar_lea.sflag [#allocation6], %s226
        %s228 = sand.u32 %s58, 1
        %s229 = smul.addr %s228, 8
        %s230 = scalar_lea.vmem [#allocation5], %s229
        // Predicated region
        $region41: #{tpu_custom_call.1} parent=35 // pred_check
          %p231 = pneg %p71
        $region42: #{tpu_custom_call.1} parent=35 // pred_check_branch
          %233 = sbr.rel (%p231) target = $region44
        $region43: #{tpu_custom_call.1} parent=35 // pred_region
          %234 = dma.done %s227, 128
        $region44: #{tpu_custom_call.1} parent=35 // pred_fallthru
          _
        // Predicated region
        $region45: #{tpu_custom_call.1} parent=35 // pred_check
          %p235 = pneg %p92
        $region46: #{tpu_custom_call.1} parent=35 // pred_check_branch
          %237 = sbr.rel (%p235) target = $region48
        $region47: #{tpu_custom_call.1} parent=35 // pred_region
          %238 = dma.done [#allocation6], 1024
        $region48: #{tpu_custom_call.1} parent=35 // pred_fallthru
          _
        %s239 = sand.u32 %s32, 1
        %s240 = scalar_lea.sflag [#allocation3], %s239
        %s241 = sand.u32 %s32, 1
        %s242 = smul.addr %s241, 8
        %s243 = scalar_lea.vmem [#allocation2], %s242
        %p244 = pneg %p45
        %p245 = pneg %p42
        %s246 = sand.u32 %s24, 1
        %s247 = scalar_lea.sflag [#allocation6], %s246
        %s248 = sand.u32 %s58, 1
        %s249 = smul.addr %s248, 8
        %s250 = scalar_lea.vmem [#allocation5], %s249
        %p251 = pneg %p71
        %p252 = pneg %p68
        %p253 = pneg %p92
        %p254 = pneg %p89
        %p255 = pneg %p113
        %p256 = pneg %p110
        %p257 = pneg %p139
        %p258 = pneg %p136
        %s259 = sand.u32 %s126, 1
        %s260 = scalar_lea.sflag [#allocation4], %s259
        %s261 = sand.u32 %s126, 1
        %s262 = smul.addr %s261, 8
        %s263 = scalar_lea.vmem [#allocation8], %s262
        %v264 = vld [vmem:[%s3] sm:$0x7]
        %v265 = vld [vmem:[%s221] sm:$0xff]
        %v266 = vld [vmem:[#allocation7] sm:$0xff]
        %v267 = vld [vmem:[#allocation7 + $0x8] sm:$0xff]
        %v268 = vld [vmem:[#allocation7 + $0x10] sm:$0xff]
        %v269 = vld [vmem:[#allocation7 + $0x18] sm:$0xff]
        %v270 = vld [vmem:[#allocation7 + $0x20] sm:$0xff]
        %v271 = vld [vmem:[#allocation7 + $0x28] sm:$0xff]
        %v272 = vld [vmem:[#allocation7 + $0x30] sm:$0xff]
        %v273 = vld [vmem:[#allocation7 + $0x38] sm:$0xff]
        %v274 = vlaneseq
        %v275 = vshrl.u32 %v274, 7
        %v276 = vsub.s32 0, %v275
        %v277 = vrot.slane %v264, %v276
        %vm278 = vcmask 523264
        %v280 = vsel %vm278, %v265, 0
        %282 = vmatprep.subr.mxu0 0.0
        %283 = vmatpush1.msra.mxu0 %v266
        %284 = vmatprep.subr.mxu0 0.0
        %285 = vmatpush1.msra.mxu0 %v267
        %286 = vmatprep.subr.mxu0 0.0
        %287 = vmatpush1.msra.mxu0 %v268
        %288 = vmatprep.subr.mxu0 0.0
        %289 = vmatpush1.msra.mxu0 %v269
        %290 = vmatprep.subr.mxu0 0.0
        %291 = vmatpush1.msra.mxu0 %v270
        %292 = vmatprep.subr.mxu0 0.0
        %293 = vmatpush1.msra.mxu0 %v271
        %294 = vmatprep.subr.mxu0 0.0
        %295 = vmatpush1.msra.mxu0 %v272
        %296 = vmatprep.subr.mxu0 0.0
        %297 = vmatpush1.msra.mxu0 %v273
        %298 = vmatprep.subr.mxu0 0.0
        %299 = vmatpush1.msra.mxu0 0.0
        %300 = vmatprep.subr.mxu0 0.0
        %301 = vmatpush1.msra.mxu0 0.0
        %302 = vmatprep.subr.mxu0 0.0
        %303 = vmatpush1.msra.mxu0 0.0
        %304 = vmatprep.subr.mxu0 0.0
        %305 = vmatpush1.msra.mxu0 0.0
        %306 = vmatprep.subr.mxu0 0.0
        %307 = vmatpush1.msra.mxu0 0.0
        %308 = vmatprep.subr.mxu0 0.0
        %309 = vmatpush1.msra.mxu0 0.0
        %310 = vmatprep.subr.mxu0 0.0
        %311 = vmatpush1.msra.mxu0 0.0
        %312 = vmatprep.subr.mxu0 0.0
        %313 = vmatpush1.msra.mxu0 0.0
        %314 = vmatprep.subr.mxu0 0.0
        %315 = vmatpush1.msra.mxu0 0.0
        %316 = vmatprep.subr.mxu0 0.0
        %317 = vmatpush1.msra.mxu0 0.0
        %318 = vmatprep.subr.mxu0 0.0
        %319 = vmatpush1.msra.mxu0 0.0
        %320 = vmatprep.subr.mxu0 0.0
        %321 = vmatpush1.msra.mxu0 0.0
        %322 = vmatprep.subr.mxu0 0.0
        %323 = vmatpush1.msra.mxu0 0.0
        %324 = vmatprep.subr.mxu0 0.0
        %325 = vmatpush1.msra.mxu0 0.0
        %326 = vmatprep.subr.mxu0 0.0
        %327 = vmatpush1.msra.mxu0 0.0
        %328 = vmatprep.subr.mxu0 0.0
        %329 = vmatpush1.msra.mxu0 0.0
        %330 = vmatprep.subr.mxu0 0.0
        %331 = vmatpush1.msra.mxu0 0.0
        %332 = vmatprep.subr.mxu0 0.0
        %333 = vmatpush1.msra.mxu0 0.0
        %334 = vmatprep.subr.mxu0 0.0
        %335 = vmatpush1.msra.mxu0 0.0
        %336 = vmatprep.subr.mxu0 0.0
        %337 = vmatpush1.msra.mxu0 0.0
        %338 = vmatprep.subr.mxu0 0.0
        %339 = vmatpush1.msra.mxu0 0.0
        %340 = vmatprep.subr.mxu0 0.0
        %341 = vmatpush1.msra.mxu0 0.0
        %342 = vmatprep.subr.mxu0 0.0
        %343 = vmatpush1.msra.mxu0 0.0
        %344 = vmatprep.subr.mxu0 0.0
        %345 = vmatpush1.msra.mxu0 0.0
        %346 = vmatprep.mubr.f32.mxu0 0.0
        %347 = vmatmul.mubr.f32.gmra.mrb[0].mxu0 %v280
        %v348 = vpop.f32.mrb[0].mxu0
        %v349 = vadd.f32 %v277, %v348
        %v350 = vpop.f32.mrb[0].mxu0
        %351 = vdwg.mxu0
        %v352 = vld [vmem:[%s230] sm:$0xff]
        %v353 = vadd.f32 %v349, %v352
        %354 = vadd.xlane.f32.xlu0 %v353
        %v355 = vpop.xlane.xlu0 %354
        %v356 = vmul.f32 %v355, 0.03125
        %v357 = vsub.f32 %v353, %v356
        %v358 = vlaneseq
        %v359 = vand.u32 %v358, 127
        %vm360 = vcmp.lt.s32.totalorder %v359, 32
        %v361 = vsel %vm360, %v357, 0.0
        %v362 = vmul.f32 %v361, %v361
        %363 = vadd.xlane.f32.xlu0 %v362
        %v364 = vpop.xlane.xlu0 %363
        %v365 = vmul.f32 %v364, 0.03125
        %v366 = vadd.f32 %v365, 1e-12
        %v367 = vrsqrt.pop %v366
        %v368 = vmul.f32 %v361, %v367
        %v369 = vlaneseq
        %v370 = vshrl.u32 %v369, 7
        %v371 = vsub.s32 1, %v370
        %v372 = vrot.slane %v264, %v371
        %v373 = vmul.f32 %v372, %v368
        %v374 = vlaneseq
        %v375 = vshrl.u32 %v374, 7
        %v376 = vsub.s32 2, %v375
        %v377 = vrot.slane %v264, %v376
        %v378 = vadd.f32 %v373, %v377
        %379 = vst [vmem:[%s263] sm:$0xff] %v378
        %s380 = sand.u32 %s126, 1
        %s381 = scalar_lea.sflag [#allocation4], %s380
        %s382 = sand.u32 %s126, 1
        %s383 = smul.addr %s382, 8
        %s384 = scalar_lea.vmem [#allocation8], %s383
        // Predicated region
        $region49: #{tpu_custom_call.1} parent=35 // pred_check
          %p385 = pneg %p136
        $region50: #{tpu_custom_call.1} parent=35 // pred_check_branch
          %387 = sbr.rel (%p385) target = $region52
        $region51: #{tpu_custom_call.1} parent=35 // pred_region
          %s389 = ssub.s32 128, 128
          %390 = vsyncadd %s381, %s389
          %s391 = smul.addr %s24, 128
          %s392 = scalar_lea.hbm %s4, %s391
          %s394 = sshll.u32 %s384, 4
          %s395 = int_to_ptr.vmem [resolvable:$true] %s394
          %397 = dma.vmem_to_hbm [thread:$0]  %s395, 128, %s392, %s381
        $region52: #{tpu_custom_call.1} parent=35 // pred_fallthru
          _
      $region36: #{tpu_custom_call.1} parent=5 // pred_fallthru
        _
      %p398 = scmp.le.s32.totalorder 2, %s19
      // Predicated region
      $region53: #{tpu_custom_call.1} parent=5 // pred_check
        %p399 = pneg %p398
      $region54: #{tpu_custom_call.1} parent=5 // pred_check_branch
        %401 = sbr.rel (%p399) target = $region56
      $region55: #{tpu_custom_call.1} parent=5 // pred_region
        %s402 = ssub.s32 %s19, 2
        // Predicated region
        $region57: #{tpu_custom_call.1} parent=55 // pred_check
          %p403 = pneg %p142
        $region58: #{tpu_custom_call.1} parent=55 // pred_check_branch
          %405 = sbr.rel (%p403) target = $region60
        $region59: #{tpu_custom_call.1} parent=55 // pred_region
          %s406 = sand.u32 %s127, 1
          %s407 = scalar_lea.sflag [#allocation4], %s406
          %s408 = sand.u32 %s127, 1
          %s409 = smul.addr %s408, 8
          %s410 = scalar_lea.vmem [#allocation8], %s409
          %411 = dma.done %s407, 128
        $region60: #{tpu_custom_call.1} parent=55 // pred_fallthru
          _
      $region56: #{tpu_custom_call.1} parent=5 // pred_fallthru
        _
    $region6: #{tpu_custom_call.1} parent=1 // loop_footer
      %s23 = sadd.s32 1, %s19
    $region7: #{tpu_custom_call.1} parent=1 // loop_footer_branch
      %18 = sbr.rel target = $region3
    $region8: #{tpu_custom_call.1} parent=1 // loop_exit
      _
    %412 = vsyncpa [#allocation3], 1
    %s413 = scalar_lea.sflag [#allocation3], 1
    %414 = vsyncpa %s413, 1
    %415 = vsyncpa [#allocation6], 1
    %s416 = scalar_lea.sflag [#allocation6], 1
    %417 = vsyncpa %s416, 1
    %418 = vsyncpa [#allocation4], 1
    %s419 = scalar_lea.sflag [#allocation4], 1
    %420 = vsyncpa %s419, 1

</llo_original>
